<compile_context>
chip_gen: v6e
topology: v6e:2x2x1
jax: 0.10.0
libtpu: 0.0.40
codegen_flags: <defaults>
</compile_context>

<pallas_src>
import jax
import jax.numpy as jnp
import numpy as np
from jax.experimental import pallas as pl
from jax.experimental.pallas import tpu as pltpu

LANE = 128
SUBLANE = 8
MAX_TILE_M = 1024            # A row tile (accumulator rows), safe on v7x 64 MiB VMEM
MAX_TILE_K = 512             # A col tile (contraction dim)
VMEM_LIMIT = 48 * 1024 * 1024


def _round_up(x, m):
    return ((x + m - 1) // m) * m


def _pick_tile(n_pad, max_tile):
    """Largest multiple of LANE that divides n_pad and is <= max_tile."""
    units = n_pad // LANE
    best = 1
    for d in range(1, units + 1):
        if units % d == 0 and d * LANE <= max_tile:
            best = d
    return best * LANE


# --------------------- feature transform kernel: Y = X @ W (bf16) -------------------
def xw_kernel(x_ref, w_ref, y_ref):
    y_ref[...] = jnp.dot(x_ref[...], w_ref[...],
                         preferred_element_type=jnp.float32).astype(y_ref.dtype)


def feature_transform(x, w, *, tile_m):
    n_pad, f_pad = x.shape
    h_pad = w.shape[1]
    return pl.pallas_call(
        xw_kernel,
        out_shape=jax.ShapeDtypeStruct((n_pad, h_pad), jnp.bfloat16),
        grid_spec=pltpu.PrefetchScalarGridSpec(
            num_scalar_prefetch=0,
            grid=(n_pad // tile_m,),
            in_specs=[
                pl.BlockSpec((tile_m, f_pad), lambda i: (i, 0)),
                pl.BlockSpec((f_pad, h_pad), lambda i: (0, 0)),   # W resident
            ],
            out_specs=pl.BlockSpec((tile_m, h_pad), lambda i: (i, 0)),
        ),
        compiler_params=pltpu.CompilerParams(
            dimension_semantics=("parallel",),
            vmem_limit_bytes=VMEM_LIMIT,
        ),
    )(x, w)


# ------------- propagation kernel: H = relu(A_hat @ Y + b), block-sparse A ----------
def gcn_prop_kernel(counts_ref, cols_ref, a_ref, y_ref, b_ref, h_ref, acc_ref):
    i = pl.program_id(0)
    k = pl.program_id(1)

    @pl.when(k == 0)
    def _():
        acc_ref[...] = jnp.zeros_like(acc_ref)

    # Only accumulate nonzero A tiles; padded steps are DMA-free no-ops
    # (their block index repeats the last valid tile).
    @pl.when(k < counts_ref[i])
    def _():
        acc_ref[...] += jnp.dot(a_ref[...], y_ref[...],
                                preferred_element_type=jnp.float32)

    @pl.when(k == pl.num_programs(1) - 1)
    def _():
        h_ref[...] = jnp.maximum(acc_ref[...] + b_ref[...], 0.0).astype(h_ref.dtype)
        # dropout: eval-mode identity


def gcn_propagate(counts, cols, a, y, b, *, tile_m, tile_k):
    n_pad = a.shape[0]
    h_pad = y.shape[1]
    nr, nc = n_pad // tile_m, n_pad // tile_k

    flops = 2 * n_pad * n_pad * h_pad                      # dense upper bound (hint only)
    bytes_accessed = (a.size * a.dtype.itemsize
                      + nr * y.size * y.dtype.itemsize
                      + b.size * b.dtype.itemsize
                      + n_pad * h_pad * 2)

    return pl.pallas_call(
        gcn_prop_kernel,
        out_shape=jax.ShapeDtypeStruct((n_pad, h_pad), jnp.bfloat16),
        grid_spec=pltpu.PrefetchScalarGridSpec(
            num_scalar_prefetch=2,                          # counts, cols in SMEM
            grid=(nr, nc),
            in_specs=[
                pl.BlockSpec((tile_m, tile_k),
                             lambda i, k, counts, cols: (i, cols[i, k])),   # A tile
                pl.BlockSpec((tile_k, h_pad),
                             lambda i, k, counts, cols: (cols[i, k], 0)),   # Y tile
                pl.BlockSpec((1, h_pad),
                             lambda i, k, counts, cols: (0, 0)),            # bias
            ],
            out_specs=pl.BlockSpec((tile_m, h_pad),
                                   lambda i, k, counts, cols: (i, 0)),
            scratch_shapes=[pltpu.VMEM((tile_m, h_pad), jnp.float32)],
        ),
        compiler_params=pltpu.CompilerParams(
            dimension_semantics=("parallel", "arbitrary"),
            vmem_limit_bytes=VMEM_LIMIT,
        ),
        cost_estimate=pl.CostEstimate(flops=flops, transcendentals=0,
                                      bytes_accessed=bytes_accessed),
    )(counts, cols, a, y, b)


# --------------------- pooling + fc kernel: (P @ H) @ Wfc + bfc ---------------------
def pool_fc_kernel(p_ref, h_ref, wfc_ref, bfc_ref, out_ref, acc_ref):
    k = pl.program_id(0)

    @pl.when(k == 0)
    def _():
        acc_ref[...] = jnp.zeros_like(acc_ref)

    acc_ref[...] += jnp.dot(p_ref[...], h_ref[...],
                            preferred_element_type=jnp.float32)

    @pl.when(k == pl.num_programs(0) - 1)
    def _():
        out_ref[...] = (jnp.dot(acc_ref[...].astype(jnp.bfloat16), wfc_ref[...],
                                preferred_element_type=jnp.float32)
                        + bfc_ref[...])


def pool_fc(p, h, wfc, bfc, *, tile_k):
    g_pad, n_pad = p.shape
    h_pad = h.shape[1]
    o_pad = wfc.shape[1]

    flops = 2 * g_pad * n_pad * h_pad + 2 * g_pad * h_pad * o_pad
    bytes_accessed = (p.size * p.dtype.itemsize + h.size * h.dtype.itemsize
                      + wfc.size * wfc.dtype.itemsize
                      + bfc.size * bfc.dtype.itemsize + g_pad * o_pad * 4)

    return pl.pallas_call(
        pool_fc_kernel,
        out_shape=jax.ShapeDtypeStruct((g_pad, o_pad), jnp.float32),
        grid_spec=pltpu.PrefetchScalarGridSpec(
            num_scalar_prefetch=0,
            grid=(n_pad // tile_k,),
            in_specs=[
                pl.BlockSpec((g_pad, tile_k), lambda k: (0, k)),     # pool matrix tile
                pl.BlockSpec((tile_k, h_pad), lambda k: (k, 0)),     # node-feature tile
                pl.BlockSpec((h_pad, o_pad), lambda k: (0, 0)),      # fc weight (bf16)
                pl.BlockSpec((1, o_pad), lambda k: (0, 0)),          # fc bias
            ],
            out_specs=pl.BlockSpec((g_pad, o_pad), lambda k: (0, 0)),
            scratch_shapes=[pltpu.VMEM((g_pad, h_pad), jnp.float32)],
        ),
        compiler_params=pltpu.CompilerParams(
            dimension_semantics=("arbitrary",),
            vmem_limit_bytes=VMEM_LIMIT,
        ),
        cost_estimate=pl.CostEstimate(flops=flops, transcendentals=0,
                                      bytes_accessed=bytes_accessed),
    )(p, h, wfc, bfc)


# ----------------------- block-sparsity map for A_hat (plain JAX) -------------------
def build_block_map(a_p, tile_m, tile_k):
    """Per row tile: number of nonzero column tiles and their (compacted) indices."""
    n_pad = a_p.shape[0]
    nr, nc = n_pad // tile_m, n_pad // tile_k
    blocks = a_p.reshape(nr, tile_m, nc, tile_k)
    nz = jnp.any(blocks != 0, axis=(1, 3))                       # (nr, nc) bool
    counts = jnp.sum(nz.astype(jnp.int32), axis=1)               # (nr,)
    order = jnp.argsort((~nz).astype(jnp.int32), axis=1)         # nonzero tiles first (stable)
    # Pad the tail with the last valid column index so the DMA index repeats
    # (Pallas elides re-fetches of an unchanged block).
    pad_src = jnp.maximum(counts - 1, 0)[:, None]
    step = jnp.arange(nc, dtype=jnp.int32)[None, :]
    cols = jnp.take_along_axis(order.astype(jnp.int32),
                               jnp.minimum(step, pad_src), axis=1)
    return counts.astype(jnp.int32), cols.astype(jnp.int32)


# ------------------------------- full forward wrapper -------------------------------
def gcn_forward(a_hat, x, w1, b1, w2, b2, pool, wfc, bfc):
    n, f_in = x.shape
    hidden = w1.shape[1]
    out_dim = wfc.shape[1]
    g = pool.shape[0]

    n_pad = _round_up(n, LANE)
    tile_m = _pick_tile(n_pad, MAX_TILE_M)
    tile_k = _pick_tile(n_pad, MAX_TILE_K)
    f_pad = _round_up(f_in, LANE)
    h_pad = _round_up(hidden, LANE)
    o_pad = _round_up(out_dim, LANE)
    g_pad = _round_up(g, SUBLANE)

    def pad2(m, r, c, dtype):
        buf = jnp.zeros((r, c), dtype)
        return buf.at[:m.shape[0], :m.shape[1]].set(m.astype(dtype))

    # bf16 operands for every MXU matmul (f32 accumulation in-kernel).
    a_p = pad2(a_hat, n_pad, n_pad, jnp.bfloat16)
    x_p = pad2(x, n_pad, f_pad, jnp.bfloat16)
    pool_p = pad2(pool, g_pad, n_pad, jnp.bfloat16)
    w1_p = pad2(w1, f_pad, h_pad, jnp.bfloat16)
    b1_p = pad2(b1.reshape(1, -1), 1, h_pad, jnp.float32)
    w2_p = pad2(w2, h_pad, h_pad, jnp.bfloat16)
    b2_p = pad2(b2.reshape(1, -1), 1, h_pad, jnp.float32)
    wfc_p = pad2(wfc, h_pad, o_pad, jnp.bfloat16)
    bfc_p = pad2(bfc.reshape(1, -1), 1, o_pad, jnp.float32)

    counts, cols = build_block_map(a_p, tile_m, tile_k)

    # conv1 + relu (+ eval dropout = identity)
    y1 = feature_transform(x_p, w1_p, tile_m=tile_m)
    h1 = gcn_propagate(counts, cols, a_p, y1, b1_p, tile_m=tile_m, tile_k=tile_k)
    # conv2 + relu (+ eval dropout = identity)
    y2 = feature_transform(h1, w2_p, tile_m=tile_m)
    h2 = gcn_propagate(counts, cols, a_p, y2, b2_p, tile_m=tile_m, tile_k=tile_k)
    # global mean pool + fc
    out = pool_fc(pool_p, h2, wfc_p, bfc_p, tile_k=tile_k)
    return out[:g, :out_dim]


# ------------------------------ graph-structure lowering ----------------------------
def build_normalized_adjacency(edge_index, num_nodes):
    """Dense A_hat = D^-1/2 (A + I) D^-1/2  (PyG GCNConv normalization)."""
    src, dst = edge_index[0], edge_index[1]
    a = jnp.zeros((num_nodes, num_nodes), jnp.float32)
    a = a.at[dst, src].set(1.0)                      # message flows src -> dst
    a = a + jnp.eye(num_nodes, dtype=jnp.float32)    # self loops
    deg = jnp.sum(a, axis=1)
    d_inv_sqrt = jnp.where(deg > 0, 1.0 / jnp.sqrt(deg), 0.0)
    return d_inv_sqrt[:, None] * a * d_inv_sqrt[None, :]


def build_mean_pool_matrix(batch, num_graphs):
    """P[g, i] = 1/|{j : batch[j]==g}| if batch[i]==g else 0."""
    onehot = (batch[None, :] == jnp.arange(num_graphs)[:, None]).astype(jnp.float32)
    counts = jnp.maximum(jnp.sum(onehot, axis=1, keepdims=True), 1.0)
    return onehot / counts


def reference_forward(a_hat, x, w1, b1, w2, b2, pool, wfc, bfc):
    h = jnp.maximum(a_hat @ (x @ w1) + b1, 0.0)
    h = jnp.maximum(a_hat @ (h @ w2) + b2, 0.0)
    return (pool @ h) @ wfc + bfc


if __name__ == "__main__":
    # ---- small deterministic problem ----
    input_dim, hidden_dim, output_dim = 8, 32, 1
    num_nodes, num_graphs = 16, 2

    key = jax.random.PRNGKey(0)
    kx, k1, k2, k3, k4, k5, k6 = jax.random.split(key, 7)

    x = jax.random.normal(kx, (num_nodes, input_dim), jnp.float32)

    # two 8-node undirected rings (graph 0: nodes 0..7, graph 1: nodes 8..15)
    edges = []
    for gidx in range(num_graphs):
        base = gidx * 8
        for i in range(8):
            u, v = base + i, base + (i + 1) % 8
            edges.append((u, v))
            edges.append((v, u))
    edge_index = jnp.array(edges, jnp.int32).T                       # (2, E)
    batch = jnp.repeat(jnp.arange(num_graphs, dtype=jnp.int32), 8)   # (N,)

    # deterministic parameters (GCNConv: weight (F_in, F_out), bias (F_out,))
    w1 = jax.random.normal(k1, (input_dim, hidden_dim), jnp.float32) * 0.1
    b1 = jax.random.normal(k2, (1, hidden_dim), jnp.float32) * 0.1
    w2 = jax.random.normal(k3, (hidden_dim, hidden_dim), jnp.float32) * 0.1
    b2 = jax.random.normal(k4, (1, hidden_dim), jnp.float32) * 0.1
    wfc = jax.random.normal(k5, (hidden_dim, output_dim), jnp.float32) * 0.1
    bfc = jax.random.normal(k6, (1, output_dim), jnp.float32) * 0.1

    # plain-JAX glue: dense normalized adjacency + mean-pool matrix
    a_hat = build_normalized_adjacency(edge_index, num_nodes)
    pool = build_mean_pool_matrix(batch, num_graphs)

    fwd = jax.jit(gcn_forward)
    out = jax.block_until_ready(fwd(a_hat, x, w1, b1, w2, b2, pool, wfc, bfc))
    assert out.shape == (num_graphs, output_dim)

    ref = reference_forward(a_hat, x, w1, b1, w2, b2, pool, wfc, bfc)
    np.testing.assert_allclose(np.asarray(out), np.asarray(ref),
                               rtol=5e-2, atol=5e-2)
    print("KERNEL_OK")
</pallas_src>

<mosaic_0001>
module attributes {stable_mosaic.version = 11 : i64} {
  func.func @gcn_prop_kernel(%arg0: i32, %arg1: i32, %arg2: memref<1xi32, #tpu.memory_space<smem>>, %arg3: memref<1x1xi32, #tpu.memory_space<smem>>, %arg4: memref<128x128xbf16, #tpu.memory_space<vmem>>, %arg5: memref<128x128xbf16, #tpu.memory_space<vmem>>, %arg6: memref<1x128xf32, #tpu.memory_space<vmem>>, %arg7: memref<128x128xbf16, #tpu.memory_space<vmem>>, %arg8: memref<128x128xf32, #tpu.memory_space<vmem>>) attributes {dimension_semantics = [#tpu.dimension_semantics<parallel>, #tpu.dimension_semantics<arbitrary>], iteration_bounds = array<i64: 1, 1>, scalar_prefetch = 2 : i64, scratch_operands = 1 : i64, tpu.core_type = #tpu.core_type<tc>, window_params = [{transform_indices = @transform_0, window_bounds = array<i64: 128, 128>}, {transform_indices = @transform_1, window_bounds = array<i64: 128, 128>}, {pipeline_mode = #tpu.pipeline_mode<synchronous>, transform_indices = @transform_2, window_bounds = array<i64: 1, 128>}, {transform_indices = @transform_3, window_bounds = array<i64: 128, 128>}]} {
    %c0_i32 = arith.constant 0 : i32
    %0 = arith.cmpi eq, %arg1, %c0_i32 : i32
    %1 = arith.extui %0 : i1 to i32
    %c0_i32_0 = arith.constant 0 : i32
    %2 = arith.cmpi ne, %1, %c0_i32_0 : i32
    scf.if %2 {
      %cst = arith.constant 0.000000e+00 : f32
      %11 = vector.broadcast %cst : f32 to vector<128x128xf32>
      %c0 = arith.constant 0 : index
      %c0_4 = arith.constant 0 : index
      %12 = vector.load %arg8[%c0, %c0_4] : memref<128x128xf32, #tpu.memory_space<vmem>>, vector<128x128xf32>
      tpu.vector_store %arg8[%c0, %c0_4], %11 {strides = array<i32>} : memref<128x128xf32, #tpu.memory_space<vmem>>, vector<128x128xf32>,
    } else {
    }
    %3 = arith.index_cast %arg0 : i32 to index
    %4 = memref.load %arg2[%3] : memref<1xi32, #tpu.memory_space<smem>>
    %5 = arith.cmpi slt, %arg1, %4 : i32
    %6 = arith.extui %5 : i1 to i32
    %c0_i32_1 = arith.constant 0 : i32
    %7 = arith.cmpi ne, %6, %c0_i32_1 : i32
    scf.if %7 {
      %c0 = arith.constant 0 : index
      %c0_4 = arith.constant 0 : index
      %11 = vector.load %arg8[%c0, %c0_4] : memref<128x128xf32, #tpu.memory_space<vmem>>, vector<128x128xf32>
      %c0_5 = arith.constant 0 : index
      %c0_6 = arith.constant 0 : index
      %12 = vector.load %arg4[%c0_5, %c0_6] : memref<128x128xbf16, #tpu.memory_space<vmem>>, vector<128x128xbf16>
      %c0_7 = arith.constant 0 : index
      %c0_8 = arith.constant 0 : index
      %13 = vector.load %arg5[%c0_7, %c0_8] : memref<128x128xbf16, #tpu.memory_space<vmem>>, vector<128x128xbf16>
      %cst = arith.constant dense<0.000000e+00> : vector<128x128xf32>
      %14 = tpu.matmul %12, %13, %cst {dimension_numbers = #tpu.dot_dimension_numbers<[1], [0], [0], [1], [0, 0, 1, 1], [], []>} : vector<128x128xbf16>, vector<128x128xbf16>, vector<128x128xf32> -> vector<128x128xf32>
      %15 = arith.addf %11, %14 : vector<128x128xf32>
      %c0_9 = arith.constant 0 : index
      %c0_10 = arith.constant 0 : index
      %16 = vector.load %arg8[%c0_9, %c0_10] : memref<128x128xf32, #tpu.memory_space<vmem>>, vector<128x128xf32>
      tpu.vector_store %arg8[%c0_9, %c0_10], %15 {strides = array<i32>} : memref<128x128xf32, #tpu.memory_space<vmem>>, vector<128x128xf32>,
    } else {
    }
    %c0_i32_2 = arith.constant 0 : i32
    %8 = arith.cmpi eq, %arg1, %c0_i32_2 : i32
    %9 = arith.extui %8 : i1 to i32
    %c0_i32_3 = arith.constant 0 : i32
    %10 = arith.cmpi ne, %9, %c0_i32_3 : i32
    scf.if %10 {
      %c0 = arith.constant 0 : index
      %c0_4 = arith.constant 0 : index
      %11 = vector.load %arg8[%c0, %c0_4] : memref<128x128xf32, #tpu.memory_space<vmem>>, vector<128x128xf32>
      %c0_5 = arith.constant 0 : index
      %c0_6 = arith.constant 0 : index
      %12 = vector.load %arg6[%c0_5, %c0_6] : memref<1x128xf32, #tpu.memory_space<vmem>>, vector<1x128xf32>
      %13 = vector.broadcast %12 : vector<1x128xf32> to vector<128x128xf32>
      %14 = arith.addf %11, %13 : vector<128x128xf32>
      %cst = arith.constant 0.000000e+00 : f32
      %15 = vector.broadcast %cst : f32 to vector<128x128xf32>
      %16 = arith.maximumf %14, %15 : vector<128x128xf32>
      %17 = arith.truncf %16 : vector<128x128xf32> to vector<128x128xbf16>
      %c0_7 = arith.constant 0 : index
      %c0_8 = arith.constant 0 : index
      %18 = vector.load %arg7[%c0_7, %c0_8] : memref<128x128xbf16, #tpu.memory_space<vmem>>, vector<128x128xbf16>
      tpu.vector_store %arg7[%c0_7, %c0_8], %17 {strides = array<i32>} : memref<128x128xbf16, #tpu.memory_space<vmem>>, vector<128x128xbf16>,
    } else {
    }
    return
  }
  func.func @transform_0(%arg0: i32, %arg1: i32, %arg2: memref<1xi32, #tpu.memory_space<smem>>, %arg3: memref<1x1xi32, #tpu.memory_space<smem>>) -> (i32, i32) {
    %0 = arith.index_cast %arg0 : i32 to index
    %1 = arith.index_cast %arg1 : i32 to index
    %2 = memref.load %arg3[%0, %1] : memref<1x1xi32, #tpu.memory_space<smem>>
    %c0_i32 = arith.constant 0 : i32
    return %arg0, %2 : i32, i32
  }
  func.func @transform_1(%arg0: i32, %arg1: i32, %arg2: memref<1xi32, #tpu.memory_space<smem>>, %arg3: memref<1x1xi32, #tpu.memory_space<smem>>) -> (i32, i32) {
    %0 = arith.index_cast %arg0 : i32 to index
    %1 = arith.index_cast %arg1 : i32 to index
    %2 = memref.load %arg3[%0, %1] : memref<1x1xi32, #tpu.memory_space<smem>>
    %c0_i32 = arith.constant 0 : i32
    %c0_i32_0 = arith.constant 0 : i32
    return %2, %c0_i32 : i32, i32
  }
  func.func @transform_2(%arg0: i32, %arg1: i32, %arg2: memref<1xi32, #tpu.memory_space<smem>>, %arg3: memref<1x1xi32, #tpu.memory_space<smem>>) -> (i32, i32) {
    %c0_i32 = arith.constant 0 : i32
    %c0_i32_0 = arith.constant 0 : i32
    %c0_i32_1 = arith.constant 0 : i32
    return %c0_i32, %c0_i32_0 : i32, i32
  }
  func.func @transform_3(%arg0: i32, %arg1: i32, %arg2: memref<1xi32, #tpu.memory_space<smem>>, %arg3: memref<1x1xi32, #tpu.memory_space<smem>>) -> (i32, i32) {
    %c0_i32 = arith.constant 0 : i32
    %c0_i32_0 = arith.constant 0 : i32
    return %arg0, %c0_i32 : i32, i32
  }
}

module attributes {stable_mosaic.version = 11 : i64} {
  func.func @xw_kernel(%arg0: i32, %arg1: memref<128x128xbf16, #tpu.memory_space<vmem>>, %arg2: memref<128x128xbf16, #tpu.memory_space<vmem>>, %arg3: memref<128x128xbf16, #tpu.memory_space<vmem>>) attributes {dimension_semantics = [#tpu.dimension_semantics<parallel>], iteration_bounds = array<i64: 1>, scalar_prefetch = 0 : i64, scratch_operands = 0 : i64, tpu.core_type = #tpu.core_type<tc>, window_params = [{transform_indices = @transform_0, window_bounds = array<i64: 128, 128>}, {pipeline_mode = #tpu.pipeline_mode<synchronous>, transform_indices = @transform_1, window_bounds = array<i64: 128, 128>}, {transform_indices = @transform_2, window_bounds = array<i64: 128, 128>}]} {
    %c0 = arith.constant 0 : index
    %c0_0 = arith.constant 0 : index
    %0 = vector.load %arg1[%c0, %c0_0] : memref<128x128xbf16, #tpu.memory_space<vmem>>, vector<128x128xbf16>
    %c0_1 = arith.constant 0 : index
    %c0_2 = arith.constant 0 : index
    %1 = vector.load %arg2[%c0_1, %c0_2] : memref<128x128xbf16, #tpu.memory_space<vmem>>, vector<128x128xbf16>
    %cst = arith.constant dense<0.000000e+00> : vector<128x128xf32>
    %2 = tpu.matmul %0, %1, %cst {dimension_numbers = #tpu.dot_dimension_numbers<[1], [0], [0], [1], [0, 0, 1, 1], [], []>} : vector<128x128xbf16>, vector<128x128xbf16>, vector<128x128xf32> -> vector<128x128xf32>
    %3 = arith.truncf %2 : vector<128x128xf32> to vector<128x128xbf16>
    %c0_3 = arith.constant 0 : index
    %c0_4 = arith.constant 0 : index
    %4 = vector.load %arg3[%c0_3, %c0_4] : memref<128x128xbf16, #tpu.memory_space<vmem>>, vector<128x128xbf16>
    tpu.vector_store %arg3[%c0_3, %c0_4], %3 {strides = array<i32>} : memref<128x128xbf16, #tpu.memory_space<vmem>>, vector<128x128xbf16>,
    return
  }
  func.func @transform_0(%arg0: i32) -> (i32, i32) {
    %c0_i32 = arith.constant 0 : i32
    %c0_i32_0 = arith.constant 0 : i32
    return %arg0, %c0_i32 : i32, i32
  }
  func.func @transform_1(%arg0: i32) -> (i32, i32) {
    %c0_i32 = arith.constant 0 : i32
    %c0_i32_0 = arith.constant 0 : i32
    %c0_i32_1 = arith.constant 0 : i32
    return %c0_i32, %c0_i32_0 : i32, i32
  }
  func.func @transform_2(%arg0: i32) -> (i32, i32) {
    %c0_i32 = arith.constant 0 : i32
    %c0_i32_0 = arith.constant 0 : i32
    return %arg0, %c0_i32 : i32, i32
  }
}

module attributes {stable_mosaic.version = 11 : i64} {
  func.func @pool_fc_kernel(%arg0: i32, %arg1: memref<8x128xbf16, #tpu.memory_space<vmem>>, %arg2: memref<128x128xbf16, #tpu.memory_space<vmem>>, %arg3: memref<128x128xbf16, #tpu.memory_space<vmem>>, %arg4: memref<1x128xf32, #tpu.memory_space<vmem>>, %arg5: memref<8x128xf32, #tpu.memory_space<vmem>>, %arg6: memref<8x128xf32, #tpu.memory_space<vmem>>) attributes {dimension_semantics = [#tpu.dimension_semantics<arbitrary>], iteration_bounds = array<i64: 1>, scalar_prefetch = 0 : i64, scratch_operands = 1 : i64, tpu.core_type = #tpu.core_type<tc>, window_params = [{transform_indices = @transform_0, window_bounds = array<i64: 8, 128>}, {transform_indices = @transform_1, window_bounds = array<i64: 128, 128>}, {pipeline_mode = #tpu.pipeline_mode<synchronous>, transform_indices = @transform_2, window_bounds = array<i64: 128, 128>}, {pipeline_mode = #tpu.pipeline_mode<synchronous>, transform_indices = @transform_3, window_bounds = array<i64: 1, 128>}, {pipeline_mode = #tpu.pipeline_mode<synchronous>, transform_indices = @transform_4, window_bounds = array<i64: 8, 128>}]} {
    %c0_i32 = arith.constant 0 : i32
    %0 = arith.cmpi eq, %arg0, %c0_i32 : i32
    %1 = arith.extui %0 : i1 to i32
    %c0_i32_0 = arith.constant 0 : i32
    %2 = arith.cmpi ne, %1, %c0_i32_0 : i32
    scf.if %2 {
      %cst_10 = arith.constant 0.000000e+00 : f32
      %12 = vector.broadcast %cst_10 : f32 to vector<8x128xf32>
      %c0_11 = arith.constant 0 : index
      %c0_12 = arith.constant 0 : index
      %13 = vector.load %arg6[%c0_11, %c0_12] : memref<8x128xf32, #tpu.memory_space<vmem>>, vector<8x128xf32>
      tpu.vector_store %arg6[%c0_11, %c0_12], %12 {strides = array<i32>} : memref<8x128xf32, #tpu.memory_space<vmem>>, vector<8x128xf32>,
    } else {
    }
    %c0 = arith.constant 0 : index
    %c0_1 = arith.constant 0 : index
    %3 = vector.load %arg6[%c0, %c0_1] : memref<8x128xf32, #tpu.memory_space<vmem>>, vector<8x128xf32>
    %c0_2 = arith.constant 0 : index
    %c0_3 = arith.constant 0 : index
    %4 = vector.load %arg1[%c0_2, %c0_3] : memref<8x128xbf16, #tpu.memory_space<vmem>>, vector<8x128xbf16>
    %c0_4 = arith.constant 0 : index
    %c0_5 = arith.constant 0 : index
    %5 = vector.load %arg2[%c0_4, %c0_5] : memref<128x128xbf16, #tpu.memory_space<vmem>>, vector<128x128xbf16>
    %cst = arith.constant dense<0.000000e+00> : vector<8x128xf32>
    %6 = tpu.matmul %4, %5, %cst {dimension_numbers = #tpu.dot_dimension_numbers<[1], [0], [0], [1], [0, 0, 1, 1], [], []>} : vector<8x128xbf16>, vector<128x128xbf16>, vector<8x128xf32> -> vector<8x128xf32>
    %7 = arith.addf %3, %6 : vector<8x128xf32>
    %c0_6 = arith.constant 0 : index
    %c0_7 = arith.constant 0 : index
    %8 = vector.load %arg6[%c0_6, %c0_7] : memref<8x128xf32, #tpu.memory_space<vmem>>, vector<8x128xf32>
    tpu.vector_store %arg6[%c0_6, %c0_7], %7 {strides = array<i32>} : memref<8x128xf32, #tpu.memory_space<vmem>>, vector<8x128xf32>,
    %c0_i32_8 = arith.constant 0 : i32
    %9 = arith.cmpi eq, %arg0, %c0_i32_8 : i32
    %10 = arith.extui %9 : i1 to i32
    %c0_i32_9 = arith.constant 0 : i32
    %11 = arith.cmpi ne, %10, %c0_i32_9 : i32
    scf.if %11 {
      %c0_10 = arith.constant 0 : index
      %c0_11 = arith.constant 0 : index
      %12 = vector.load %arg6[%c0_10, %c0_11] : memref<8x128xf32, #tpu.memory_space<vmem>>, vector<8x128xf32>
      %13 = arith.truncf %12 : vector<8x128xf32> to vector<8x128xbf16>
      %c0_12 = arith.constant 0 : index
      %c0_13 = arith.constant 0 : index
      %14 = vector.load %arg3[%c0_12, %c0_13] : memref<128x128xbf16, #tpu.memory_space<vmem>>, vector<128x128xbf16>
      %cst_14 = arith.constant dense<0.000000e+00> : vector<8x128xf32>
      %15 = tpu.matmul %13, %14, %cst_14 {dimension_numbers = #tpu.dot_dimension_numbers<[1], [0], [0], [1], [0, 0, 1, 1], [], []>} : vector<8x128xbf16>, vector<128x128xbf16>, vector<8x128xf32> -> vector<8x128xf32>
      %c0_15 = arith.constant 0 : index
      %c0_16 = arith.constant 0 : index
      %16 = vector.load %arg4[%c0_15, %c0_16] : memref<1x128xf32, #tpu.memory_space<vmem>>, vector<1x128xf32>
      %17 = vector.broadcast %16 : vector<1x128xf32> to vector<8x128xf32>
      %18 = arith.addf %15, %17 : vector<8x128xf32>
      %c0_17 = arith.constant 0 : index
      %c0_18 = arith.constant 0 : index
      %19 = vector.load %arg5[%c0_17, %c0_18] : memref<8x128xf32, #tpu.memory_space<vmem>>, vector<8x128xf32>
      tpu.vector_store %arg5[%c0_17, %c0_18], %18 {strides = array<i32>} : memref<8x128xf32, #tpu.memory_space<vmem>>, vector<8x128xf32>,
    } else {
    }
    return
  }
  func.func @transform_0(%arg0: i32) -> (i32, i32) {
    %c0_i32 = arith.constant 0 : i32
    %c0_i32_0 = arith.constant 0 : i32
    return %c0_i32, %arg0 : i32, i32
  }
  func.func @transform_1(%arg0: i32) -> (i32, i32) {
    %c0_i32 = arith.constant 0 : i32
    %c0_i32_0 = arith.constant 0 : i32
    return %arg0, %c0_i32 : i32, i32
  }
  func.func @transform_2(%arg0: i32) -> (i32, i32) {
    %c0_i32 = arith.constant 0 : i32
    %c0_i32_0 = arith.constant 0 : i32
    %c0_i32_1 = arith.constant 0 : i32
    return %c0_i32, %c0_i32_0 : i32, i32
  }
  func.func @transform_3(%arg0: i32) -> (i32, i32) {
    %c0_i32 = arith.constant 0 : i32
    %c0_i32_0 = arith.constant 0 : i32
    %c0_i32_1 = arith.constant 0 : i32
    return %c0_i32, %c0_i32_0 : i32, i32
  }
  func.func @transform_4(%arg0: i32) -> (i32, i32) {
    %c0_i32 = arith.constant 0 : i32
    %c0_i32_0 = arith.constant 0 : i32
    %c0_i32_1 = arith.constant 0 : i32
    return %c0_i32, %c0_i32_0 : i32, i32
  }
}

</mosaic_0001>

<llo_original>
// kernel: gcn_forward.6
$region0: #{gcn_forward.6}
  #allocation0 [shape = 'u32[]', space=smem, size = 0x4, offset = 0x4, fixed_abs, tag = 'smem constant byte address 0x4 - core index']
  #allocation1 [shape = 'u32[144,128]{1,0:T(1,128)}', space=vmem, size = 0x12000, scoped, tag = 'internal scratch']
  #allocation2 [shape = 'f32[128,128]{1,0:T(8,128)}', space=vmem, size = 0x10000, scoped, tag = 'scratch operand']
  #allocation3 [shape = 's32[1]{0}', space=sflag, size = 0x4, scoped, tag = 'scoped memory for gcn_forward.6']
  #allocation4 [shape = 's32[1]{0:T(128)S(6)}', space=smem, size = 0x200, scoped, tag = 'prefetched SMEM operand 0']
  #allocation5 [shape = 's32[1,1]{1,0:T(1,128)S(6)}', space=smem, size = 0x200, scoped, tag = 'prefetched SMEM operand 1']
  %s0 = inlined_call_operand.<no memory space> [shape: s32[1], index: 0, kind: input, shape index: {}]
  %s1 = inlined_call_operand.<no memory space> [shape: s32[1,1], index: 1, kind: input, shape index: {}]
  %s2 = inlined_call_operand.vmem [shape: bf16[128,128], index: 2, kind: input, shape index: {}]
  %s3 = inlined_call_operand.vmem [shape: bf16[128,128], index: 3, kind: input, shape index: {}]
  %s4 = inlined_call_operand.vmem [shape: f32[1,128], index: 4, kind: input, shape index: {}]
  %s5 = inlined_call_operand.vmem [shape: bf16[128,128], index: 5, kind: output, shape index: {}]
  %s6 = sld [smem:[#allocation0]]
  $region34: #{gcn_forward.6} parent=0
    _
  %s8 = ssub.s32 1, %s6
  %s9 = scalar_select 0, %s8, %s6
  %10 = sst [smem:[#allocation4]] %s0
  %11 = sst [smem:[#allocation5]] %s1
  // Predicated region
  $region2: #{gcn_forward.6} parent=0 // pred_check
    _
  $region3: #{gcn_forward.6} parent=0 // pred_check_branch
    %13 = sbr.rel (0) target = $region5
  $region4: #{gcn_forward.6} parent=0 // pred_region
    %s14 = sadd.s32 0, 0
    %s15 = smul.u32 %s14, 128
    %s16 = sadd.s32 %s15, 0
    %s17 = sld [smem:[#allocation5 + %s16]]
    %p18 = scmp.lt.s32.totalorder %s17, 0
    %s19 = scalar_select %p18, %s17, 0
    %s20 = smul.addr %s19, 4
    %s21 = scalar_lea.vmem %s2, %s20
    %s22 = sadd.s32 0, 0
    %s23 = smul.u32 %s22, 128
    %s24 = sadd.s32 %s23, 0
    %s25 = sld [smem:[#allocation5 + %s24]]
  $region5: #{gcn_forward.6} parent=0 // pred_fallthru
    _
  // Predicated region
  $region6: #{gcn_forward.6} parent=0 // pred_check
    _
  $region7: #{gcn_forward.6} parent=0 // pred_check_branch
    %27 = sbr.rel (0) target = $region9
  $region8: #{gcn_forward.6} parent=0 // pred_region
    %s28 = sadd.s32 0, 0
    %s29 = smul.u32 %s28, 128
    %s30 = sadd.s32 %s29, 0
    %s31 = sld [smem:[#allocation5 + %s30]]
    %s32 = smul.u32 16, %s31
    %p33 = scmp.lt.s32.totalorder %s32, 15
    %s34 = scalar_select %p33, %s32, 15
    %s35 = smul.addr %s34, 4
    %s36 = scalar_lea.vmem %s3, %s35
    %s37 = sadd.s32 0, 0
    %s38 = smul.u32 %s37, 128
    %s39 = sadd.s32 %s38, 0
    %s40 = sld [smem:[#allocation5 + %s39]]
    %s41 = smul.u32 16, %s40
  $region9: #{gcn_forward.6} parent=0 // pred_fallthru
    _
  // Predicated region
  $region10: #{gcn_forward.6} parent=0 // pred_check
    _
  $region11: #{gcn_forward.6} parent=0 // pred_check_branch
    %43 = sbr.rel (0) target = $region13
  $region12: #{gcn_forward.6} parent=0 // pred_region
    _
  $region13: #{gcn_forward.6} parent=0 // pred_fallthru
    _
  %s44 = sadd.s32 0, 0
  %s45 = smul.u32 %s44, 128
  %s46 = sadd.s32 %s45, 0
  %s47 = sld [smem:[#allocation5 + %s46]]
  %p48 = scmp.lt.s32.totalorder %s47, 0
  %s49 = scalar_select %p48, %s47, 0
  %s50 = smul.addr %s49, 4
  %s51 = scalar_lea.vmem %s2, %s50
  %s52 = sadd.s32 0, 0
  %s53 = smul.u32 %s52, 128
  %s54 = sadd.s32 %s53, 0
  %s55 = sld [smem:[#allocation5 + %s54]]
  %s56 = smul.u32 16, %s55
  %p57 = scmp.lt.s32.totalorder %s56, 15
  %s58 = scalar_select %p57, %s56, 15
  %s59 = smul.addr %s58, 4
  %s60 = scalar_lea.vmem %s3, %s59
  %s61 = sadd.s32 0, 0
  %s62 = smul.u32 %s61, 128
  %s63 = sadd.s32 %s62, 0
  %s64 = sld [smem:[#allocation5 + %s63]]
  %p65 = scmp.lt.s32.totalorder %s64, 0
  %s66 = scalar_select %p65, %s64, 0
  %s67 = smul.addr %s66, 4
  %s68 = scalar_lea.vmem %s2, %s67
  %s69 = sadd.s32 0, 0
  %s70 = smul.u32 %s69, 128
  %s71 = sadd.s32 %s70, 0
  %s72 = sld [smem:[#allocation5 + %s71]]
  %s73 = sadd.s32 0, 0
  %s74 = smul.u32 %s73, 128
  %s75 = sadd.s32 %s74, 0
  %s76 = sld [smem:[#allocation5 + %s75]]
  %s77 = smul.u32 16, %s76
  %p78 = scmp.lt.s32.totalorder %s77, 15
  %s79 = scalar_select %p78, %s77, 15
  %s80 = smul.addr %s79, 4
  %s81 = scalar_lea.vmem %s3, %s80
  %s82 = sadd.s32 0, 0
  %s83 = smul.u32 %s82, 128
  %s84 = sadd.s32 %s83, 0
  %s85 = sld [smem:[#allocation5 + %s84]]
  %s86 = smul.u32 16, %s85
  %p88 = scmp.eq.s32.totalorder 0, 0
  // Predicated region
  $region14: #{gcn_forward.6} parent=0 // pred_check
    %p89 = pneg %p88
  $region15: #{gcn_forward.6} parent=0 // pred_check_branch
    %91 = sbr.rel (%p89) target = $region17
  $region16: #{gcn_forward.6} parent=0 // pred_region
    %92 = vst [vmem:[#allocation2] sm:$0xff] 0.0
    %93 = vst [vmem:[#allocation2 + $0x8] sm:$0xff] 0.0
    %94 = vst [vmem:[#allocation2 + $0x10] sm:$0xff] 0.0
    %95 = vst [vmem:[#allocation2 + $0x18] sm:$0xff] 0.0
    %96 = vst [vmem:[#allocation2 + $0x20] sm:$0xff] 0.0
    %97 = vst [vmem:[#allocation2 + $0x28] sm:$0xff] 0.0
    %98 = vst [vmem:[#allocation2 + $0x30] sm:$0xff] 0.0
    %99 = vst [vmem:[#allocation2 + $0x38] sm:$0xff] 0.0
    %100 = vst [vmem:[#allocation2 + $0x40] sm:$0xff] 0.0
    %101 = vst [vmem:[#allocation2 + $0x48] sm:$0xff] 0.0
    %102 = vst [vmem:[#allocation2 + $0x50] sm:$0xff] 0.0
    %103 = vst [vmem:[#allocation2 + $0x58] sm:$0xff] 0.0
    %104 = vst [vmem:[#allocation2 + $0x60] sm:$0xff] 0.0
    %105 = vst [vmem:[#allocation2 + $0x68] sm:$0xff] 0.0
    %106 = vst [vmem:[#allocation2 + $0x70] sm:$0xff] 0.0
    %107 = vst [vmem:[#allocation2 + $0x78] sm:$0xff] 0.0
  $region17: #{gcn_forward.6} parent=0 // pred_fallthru
    _
  %s108 = sld [smem:[#allocation4]]
  %p109 = scmp.lt.s32.totalorder 0, %s108
  // Predicated region
  $region18: #{gcn_forward.6} parent=0 // pred_check
    %p110 = pneg %p109
  $region19: #{gcn_forward.6} parent=0 // pred_check_branch
    %112 = sbr.rel (%p110) target = $region21
  $region20: #{gcn_forward.6} parent=0 // pred_region
    %v113 = vld [vmem:[#allocation2] sm:$0xff]
    %v114 = vld [vmem:[#allocation2 + $0x8] sm:$0xff]
    %v115 = vld [vmem:[#allocation2 + $0x10] sm:$0xff]
    %v116 = vld [vmem:[#allocation2 + $0x18] sm:$0xff]
    %v117 = vld [vmem:[#allocation2 + $0x20] sm:$0xff]
    %v118 = vld [vmem:[#allocation2 + $0x28] sm:$0xff]
    %v119 = vld [vmem:[#allocation2 + $0x30] sm:$0xff]
    %v120 = vld [vmem:[#allocation2 + $0x38] sm:$0xff]
    %v121 = vld [vmem:[#allocation2 + $0x40] sm:$0xff]
    %v122 = vld [vmem:[#allocation2 + $0x48] sm:$0xff]
    %v123 = vld [vmem:[#allocation2 + $0x50] sm:$0xff]
    %v124 = vld [vmem:[#allocation2 + $0x58] sm:$0xff]
    %v125 = vld [vmem:[#allocation2 + $0x60] sm:$0xff]
    %v126 = vld [vmem:[#allocation2 + $0x68] sm:$0xff]
    %v127 = vld [vmem:[#allocation2 + $0x70] sm:$0xff]
    %v128 = vld [vmem:[#allocation2 + $0x78] sm:$0xff]
    %v129 = vld [vmem:[%s68] sm:$0xf]
    %v130 = vld [vmem:[%s68 + $0x4] sm:$0xf]
    %v131 = vld [vmem:[%s68 + $0x8] sm:$0xf]
    %v132 = vld [vmem:[%s68 + $0xc] sm:$0xf]
    %v133 = vld [vmem:[%s68 + $0x10] sm:$0xf]
    %v134 = vld [vmem:[%s68 + $0x14] sm:$0xf]
    %v135 = vld [vmem:[%s68 + $0x18] sm:$0xf]
    %v136 = vld [vmem:[%s68 + $0x1c] sm:$0xf]
    %v137 = vld [vmem:[%s68 + $0x20] sm:$0xf]
    %v138 = vld [vmem:[%s68 + $0x24] sm:$0xf]
    %v139 = vld [vmem:[%s68 + $0x28] sm:$0xf]
    %v140 = vld [vmem:[%s68 + $0x2c] sm:$0xf]
    %v141 = vld [vmem:[%s68 + $0x30] sm:$0xf]
    %v142 = vld [vmem:[%s68 + $0x34] sm:$0xf]
    %v143 = vld [vmem:[%s68 + $0x38] sm:$0xf]
    %v144 = vld [vmem:[%s68 + $0x3c] sm:$0xf]
    %v145 = vld [vmem:[%s81] sm:$0xf]
    %v146 = vld [vmem:[%s81 + $0x4] sm:$0xf]
    %v147 = vld [vmem:[%s81 + $0x8] sm:$0xf]
    %v148 = vld [vmem:[%s81 + $0xc] sm:$0xf]
    %v149 = vld [vmem:[%s81 + $0x10] sm:$0xf]
    %v150 = vld [vmem:[%s81 + $0x14] sm:$0xf]
    %v151 = vld [vmem:[%s81 + $0x18] sm:$0xf]
    %v152 = vld [vmem:[%s81 + $0x1c] sm:$0xf]
    %v153 = vld [vmem:[%s81 + $0x20] sm:$0xf]
    %v154 = vld [vmem:[%s81 + $0x24] sm:$0xf]
    %v155 = vld [vmem:[%s81 + $0x28] sm:$0xf]
    %v156 = vld [vmem:[%s81 + $0x2c] sm:$0xf]
    %v157 = vld [vmem:[%s81 + $0x30] sm:$0xf]
    %v158 = vld [vmem:[%s81 + $0x34] sm:$0xf]
    %v159 = vld [vmem:[%s81 + $0x38] sm:$0xf]
    %v160 = vld [vmem:[%s81 + $0x3c] sm:$0xf]
    %v177 = vunpack.c.l.b16 %v129
    %v178 = vunpack.c.l.b16 %v130
    %v179 = vunpack.c.l.b16 %v131
    %v180 = vunpack.c.l.b16 %v132
    %v181 = vunpack.c.l.b16 %v133
    %v182 = vunpack.c.l.b16 %v134
    %v183 = vunpack.c.l.b16 %v135
    %v184 = vunpack.c.l.b16 %v136
    %v185 = vunpack.c.l.b16 %v137
    %v186 = vunpack.c.l.b16 %v138
    %v187 = vunpack.c.l.b16 %v139
    %v188 = vunpack.c.l.b16 %v140
    %v189 = vunpack.c.l.b16 %v141
    %v190 = vunpack.c.l.b16 %v142
    %v191 = vunpack.c.l.b16 %v143
    %v192 = vunpack.c.l.b16 %v144
    %v193 = vpack.c.b16 %v178, %v177
    %v194 = vpack.c.b16 %v180, %v179
    %v195 = vpack.c.b16 %v182, %v181
    %v196 = vpack.c.b16 %v184, %v183
    %v197 = vpack.c.b16 %v186, %v185
    %v198 = vpack.c.b16 %v188, %v187
    %v199 = vpack.c.b16 %v190, %v189
    %v200 = vpack.c.b16 %v192, %v191
    %v225 = vunpack.c.l.b16 %v145
    %v226 = vunpack.c.l.b16 %v146
    %v227 = vunpack.c.l.b16 %v147
    %v228 = vunpack.c.l.b16 %v148
    %v229 = vunpack.c.l.b16 %v149
    %v230 = vunpack.c.l.b16 %v150
    %v231 = vunpack.c.l.b16 %v151
    %v232 = vunpack.c.l.b16 %v152
    %v233 = vunpack.c.l.b16 %v153
    %v234 = vunpack.c.l.b16 %v154
    %v235 = vunpack.c.l.b16 %v155
    %v236 = vunpack.c.l.b16 %v156
    %v237 = vunpack.c.l.b16 %v157
    %v238 = vunpack.c.l.b16 %v158
    %v239 = vunpack.c.l.b16 %v159
    %v240 = vunpack.c.l.b16 %v160
    %v241 = vpack.c.b16 %v226, %v225
    %v242 = vpack.c.b16 %v228, %v227
    %v243 = vpack.c.b16 %v230, %v229
    %v244 = vpack.c.b16 %v232, %v231
    %v245 = vpack.c.b16 %v234, %v233
    %v246 = vpack.c.b16 %v236, %v235
    %v247 = vpack.c.b16 %v238, %v237
    %v248 = vpack.c.b16 %v240, %v239
    %257 = vmatprep.subr.bf16.mxu0 0
    %258 = vmatpush1.bf16.msra.mxu0 %v248
    %259 = vmatprep.subr.bf16.mxu0 0
    %260 = vmatpush1.bf16.msra.mxu0 %v247
    %261 = vmatprep.subr.bf16.mxu0 0
    %262 = vmatpush1.bf16.msra.mxu0 %v246
    %263 = vmatprep.subr.bf16.mxu0 0
    %264 = vmatpush1.bf16.msra.mxu0 %v245
    %265 = vmatprep.subr.bf16.mxu0 0
    %266 = vmatpush1.bf16.msra.mxu0 %v244
    %267 = vmatprep.subr.bf16.mxu0 0
    %268 = vmatpush1.bf16.msra.mxu0 %v243
    %269 = vmatprep.subr.bf16.mxu0 0
    %270 = vmatpush1.bf16.msra.mxu0 %v242
    %271 = vmatprep.subr.bf16.mxu0 0
    %272 = vmatpush1.bf16.msra.mxu0 %v241
    %273 = vmatprep.subr.bf16.mxu0 0
    %274 = vmatpush2.bf16.msra.mxu0 0
    %275 = vmatprep.subr.bf16.mxu0 0
    %276 = vmatpush2.bf16.msra.mxu0 0
    %277 = vmatprep.subr.bf16.mxu0 0
    %278 = vmatpush2.bf16.msra.mxu0 0
    %279 = vmatprep.subr.bf16.mxu0 0
    %280 = vmatpush2.bf16.msra.mxu0 0
    %281 = vmatprep.subr.bf16.mxu0 0
    %282 = vmatpush2.bf16.msra.mxu0 0
    %283 = vmatprep.subr.bf16.mxu0 0
    %284 = vmatpush2.bf16.msra.mxu0 0
    %285 = vmatprep.subr.bf16.mxu0 0
    %286 = vmatpush2.bf16.msra.mxu0 0
    %287 = vmatprep.subr.bf16.mxu0 0
    %288 = vmatpush2.bf16.msra.mxu0 0
    %289 = vmatprep.mubr.bf16.mxu0 0
    %290 = vmatmul.mubr.bf16.gmra.mxu0 %v193
    %v291 = vpop.f32.mrf.mxu0
    %v292 = vadd.f32 0.0, %v291
    %v293 = vpop.f32.mrf.mxu0
    %v294 = vpop.f32.mrf.mxu0
    %v295 = vadd.f32 0.0, %v294
    %v296 = vpop.f32.mrf.mxu0
    %297 = vmatprep.mubr.bf16.mxu0 0
    %298 = vmatmul.mubr.bf16.gmra.mxu0 %v194
    %v299 = vpop.f32.mrf.mxu0
    %v300 = vadd.f32 0.0, %v299
    %v301 = vpop.f32.mrf.mxu0
    %v302 = vpop.f32.mrf.mxu0
    %v303 = vadd.f32 0.0, %v302
    %v304 = vpop.f32.mrf.mxu0
    %305 = vmatprep.mubr.bf16.mxu0 0
    %306 = vmatmul.mubr.bf16.gmra.mxu0 %v195
    %v307 = vpop.f32.mrf.mxu0
    %v308 = vadd.f32 0.0, %v307
    %v309 = vpop.f32.mrf.mxu0
    %v310 = vpop.f32.mrf.mxu0
    %v311 = vadd.f32 0.0, %v310
    %v312 = vpop.f32.mrf.mxu0
    %313 = vmatprep.mubr.bf16.mxu0 0
    %314 = vmatmul.mubr.bf16.gmra.mxu0 %v196
    %v315 = vpop.f32.mrf.mxu0
    %v316 = vadd.f32 0.0, %v315
    %v317 = vpop.f32.mrf.mxu0
    %v318 = vpop.f32.mrf.mxu0
    %v319 = vadd.f32 0.0, %v318
    %v320 = vpop.f32.mrf.mxu0
    %321 = vmatprep.mubr.bf16.mxu0 0
    %322 = vmatmul.mubr.bf16.gmra.mxu0 %v197
    %v323 = vpop.f32.mrf.mxu0
    %v324 = vadd.f32 0.0, %v323
    %v325 = vpop.f32.mrf.mxu0
    %v326 = vpop.f32.mrf.mxu0
    %v327 = vadd.f32 0.0, %v326
    %v328 = vpop.f32.mrf.mxu0
    %329 = vmatprep.mubr.bf16.mxu0 0
    %330 = vmatmul.mubr.bf16.gmra.mxu0 %v198
    %v331 = vpop.f32.mrf.mxu0
    %v332 = vadd.f32 0.0, %v331
    %v333 = vpop.f32.mrf.mxu0
    %v334 = vpop.f32.mrf.mxu0
    %v335 = vadd.f32 0.0, %v334
    %v336 = vpop.f32.mrf.mxu0
    %337 = vmatprep.mubr.bf16.mxu0 0
    %338 = vmatmul.mubr.bf16.gmra.mxu0 %v199
    %v339 = vpop.f32.mrf.mxu0
    %v340 = vadd.f32 0.0, %v339
    %v341 = vpop.f32.mrf.mxu0
    %v342 = vpop.f32.mrf.mxu0
    %v343 = vadd.f32 0.0, %v342
    %v344 = vpop.f32.mrf.mxu0
    %345 = vmatprep.mubr.bf16.mxu0 0
    %346 = vmatmul.mubr.bf16.gmra.mxu0 %v200
    %v347 = vpop.f32.mrf.mxu0
    %v348 = vadd.f32 0.0, %v347
    %v349 = vpop.f32.mrf.mxu0
    %v350 = vpop.f32.mrf.mxu0
    %v351 = vadd.f32 0.0, %v350
    %v352 = vpop.f32.mrf.mxu0
    %353 = vdwg.mxu0
    %v354 = vadd.f32 %v113, %v292
    %v355 = vadd.f32 %v114, %v295
    %v356 = vadd.f32 %v115, %v300
    %v357 = vadd.f32 %v116, %v303
    %v358 = vadd.f32 %v117, %v308
    %v359 = vadd.f32 %v118, %v311
    %v360 = vadd.f32 %v119, %v316
    %v361 = vadd.f32 %v120, %v319
    %v362 = vadd.f32 %v121, %v324
    %v363 = vadd.f32 %v122, %v327
    %v364 = vadd.f32 %v123, %v332
    %v365 = vadd.f32 %v124, %v335
    %v366 = vadd.f32 %v125, %v340
    %v367 = vadd.f32 %v126, %v343
    %v368 = vadd.f32 %v127, %v348
    %v369 = vadd.f32 %v128, %v351
    %370 = vst [vmem:[#allocation2] sm:$0xff] %v354
    %371 = vst [vmem:[#allocation2 + $0x8] sm:$0xff] %v355
    %372 = vst [vmem:[#allocation2 + $0x10] sm:$0xff] %v356
    %373 = vst [vmem:[#allocation2 + $0x18] sm:$0xff] %v357
    %374 = vst [vmem:[#allocation2 + $0x20] sm:$0xff] %v358
    %375 = vst [vmem:[#allocation2 + $0x28] sm:$0xff] %v359
    %376 = vst [vmem:[#allocation2 + $0x30] sm:$0xff] %v360
    %377 = vst [vmem:[#allocation2 + $0x38] sm:$0xff] %v361
    %378 = vst [vmem:[#allocation2 + $0x40] sm:$0xff] %v362
    %379 = vst [vmem:[#allocation2 + $0x48] sm:$0xff] %v363
    %380 = vst [vmem:[#allocation2 + $0x50] sm:$0xff] %v364
    %381 = vst [vmem:[#allocation2 + $0x58] sm:$0xff] %v365
    %382 = vst [vmem:[#allocation2 + $0x60] sm:$0xff] %v366
    %383 = vst [vmem:[#allocation2 + $0x68] sm:$0xff] %v367
    %384 = vst [vmem:[#allocation2 + $0x70] sm:$0xff] %v368
    %385 = vst [vmem:[#allocation2 + $0x78] sm:$0xff] %v369
  $region21: #{gcn_forward.6} parent=0 // pred_fallthru
    _
  // Predicated region
  $region22: #{gcn_forward.6} parent=0 // pred_check
    %p386 = pneg %p88
  $region23: #{gcn_forward.6} parent=0 // pred_check_branch
    %388 = sbr.rel (%p386) target = $region25
  $region24: #{gcn_forward.6} parent=0 // pred_region
    %v389 = vld [vmem:[#allocation2] sm:$0xff]
    %v390 = vld [vmem:[#allocation2 + $0x8] sm:$0xff]
    %v391 = vld [vmem:[#allocation2 + $0x10] sm:$0xff]
    %v392 = vld [vmem:[#allocation2 + $0x18] sm:$0xff]
    %v393 = vld [vmem:[#allocation2 + $0x20] sm:$0xff]
    %v394 = vld [vmem:[#allocation2 + $0x28] sm:$0xff]
    %v395 = vld [vmem:[#allocation2 + $0x30] sm:$0xff]
    %v396 = vld [vmem:[#allocation2 + $0x38] sm:$0xff]
    %v397 = vld [vmem:[#allocation2 + $0x40] sm:$0xff]
    %v398 = vld [vmem:[#allocation2 + $0x48] sm:$0xff]
    %v399 = vld [vmem:[#allocation2 + $0x50] sm:$0xff]
    %v400 = vld [vmem:[#allocation2 + $0x58] sm:$0xff]
    %v401 = vld [vmem:[#allocation2 + $0x60] sm:$0xff]
    %v402 = vld [vmem:[#allocation2 + $0x68] sm:$0xff]
    %v403 = vld [vmem:[#allocation2 + $0x70] sm:$0xff]
    %v404 = vld [vmem:[#allocation2 + $0x78] sm:$0xff]
    %v405 = vld [vmem:[%s4] sm:$0x1]
    %v407 = vlaneseq
    %v408 = vshrl.u32 %v407, 7
    %v409 = vsub.s32 0, %v408
    %v410 = vrot.slane %v405, %v409
    %v412 = vadd.f32 %v389, %v410
    %v413 = vadd.f32 %v390, %v410
    %v414 = vadd.f32 %v391, %v410
    %v415 = vadd.f32 %v392, %v410
    %v416 = vadd.f32 %v393, %v410
    %v417 = vadd.f32 %v394, %v410
    %v418 = vadd.f32 %v395, %v410
    %v419 = vadd.f32 %v396, %v410
    %v420 = vadd.f32 %v397, %v410
    %v421 = vadd.f32 %v398, %v410
    %v422 = vadd.f32 %v399, %v410
    %v423 = vadd.f32 %v400, %v410
    %v424 = vadd.f32 %v401, %v410
    %v425 = vadd.f32 %v402, %v410
    %v426 = vadd.f32 %v403, %v410
    %v427 = vadd.f32 %v404, %v410
    %v428 = vmax.f32 %v412, 0.0
    %v429 = vmax.f32 %v413, 0.0
    %v430 = vmax.f32 %v414, 0.0
    %v431 = vmax.f32 %v415, 0.0
    %v432 = vmax.f32 %v416, 0.0
    %v433 = vmax.f32 %v417, 0.0
    %v434 = vmax.f32 %v418, 0.0
    %v435 = vmax.f32 %v419, 0.0
    %v436 = vmax.f32 %v420, 0.0
    %v437 = vmax.f32 %v421, 0.0
    %v438 = vmax.f32 %v422, 0.0
    %v439 = vmax.f32 %v423, 0.0
    %v440 = vmax.f32 %v424, 0.0
    %v441 = vmax.f32 %v425, 0.0
    %v442 = vmax.f32 %v426, 0.0
    %v443 = vmax.f32 %v427, 0.0
    %v444 = vpack.c.bf16 %v429, %v428
    %v445 = vpack.c.bf16 %v431, %v430
    %v446 = vpack.c.bf16 %v433, %v432
    %v447 = vpack.c.bf16 %v435, %v434
    %v448 = vpack.c.bf16 %v437, %v436
    %v449 = vpack.c.bf16 %v439, %v438
    %v450 = vpack.c.bf16 %v441, %v440
    %v451 = vpack.c.bf16 %v443, %v442
    %v460 = vunpack.c.l.b16 %v444
    %v461 = vunpack.c.h.b16 %v444
    %v462 = vunpack.c.l.b16 %v445
    %v463 = vunpack.c.h.b16 %v445
    %v464 = vunpack.c.l.b16 %v446
    %v465 = vunpack.c.h.b16 %v446
    %v466 = vunpack.c.l.b16 %v447
    %v467 = vunpack.c.h.b16 %v447
    %v468 = vunpack.c.l.b16 %v448
    %v469 = vunpack.c.h.b16 %v448
    %v470 = vunpack.c.l.b16 %v449
    %v471 = vunpack.c.h.b16 %v449
    %v472 = vunpack.c.l.b16 %v450
    %v473 = vunpack.c.h.b16 %v450
    %v474 = vunpack.c.l.b16 %v451
    %v475 = vunpack.c.h.b16 %v451
    %v476 = vpack.c.b16 %v460, %v460
    %v477 = vpack.c.b16 %v461, %v461
    %v478 = vpack.c.b16 %v462, %v462
    %v479 = vpack.c.b16 %v463, %v463
    %v480 = vpack.c.b16 %v464, %v464
    %v481 = vpack.c.b16 %v465, %v465
    %v482 = vpack.c.b16 %v466, %v466
    %v483 = vpack.c.b16 %v467, %v467
    %v484 = vpack.c.b16 %v468, %v468
    %v485 = vpack.c.b16 %v469, %v469
    %v486 = vpack.c.b16 %v470, %v470
    %v487 = vpack.c.b16 %v471, %v471
    %v488 = vpack.c.b16 %v472, %v472
    %v489 = vpack.c.b16 %v473, %v473
    %v490 = vpack.c.b16 %v474, %v474
    %v491 = vpack.c.b16 %v475, %v475
    %508 = vst [vmem:[%s5] sm:$0xf] %v476
    %509 = vst [vmem:[%s5 + $0x4] sm:$0xf] %v477
    %510 = vst [vmem:[%s5 + $0x8] sm:$0xf] %v478
    %511 = vst [vmem:[%s5 + $0xc] sm:$0xf] %v479
    %512 = vst [vmem:[%s5 + $0x10] sm:$0xf] %v480
    %513 = vst [vmem:[%s5 + $0x14] sm:$0xf] %v481
    %514 = vst [vmem:[%s5 + $0x18] sm:$0xf] %v482
    %515 = vst [vmem:[%s5 + $0x1c] sm:$0xf] %v483
    %516 = vst [vmem:[%s5 + $0x20] sm:$0xf] %v484
    %517 = vst [vmem:[%s5 + $0x24] sm:$0xf] %v485
    %518 = vst [vmem:[%s5 + $0x28] sm:$0xf] %v486
    %519 = vst [vmem:[%s5 + $0x2c] sm:$0xf] %v487
    %520 = vst [vmem:[%s5 + $0x30] sm:$0xf] %v488
    %521 = vst [vmem:[%s5 + $0x34] sm:$0xf] %v489
    %522 = vst [vmem:[%s5 + $0x38] sm:$0xf] %v490
    %523 = vst [vmem:[%s5 + $0x3c] sm:$0xf] %v491
  $region25: #{gcn_forward.6} parent=0 // pred_fallthru
    _
  // Predicated region
  $region26: #{gcn_forward.6} parent=0 // pred_check
    _
  $region27: #{gcn_forward.6} parent=0 // pred_check_branch
    %525 = sbr.rel (0) target = $region29
  $region28: #{gcn_forward.6} parent=0 // pred_region
    _
  $region29: #{gcn_forward.6} parent=0 // pred_fallthru
    _
  // Predicated region
  $region30: #{gcn_forward.6} parent=0 // pred_check
    _
  $region31: #{gcn_forward.6} parent=0 // pred_check_branch
    %527 = sbr.rel (0) target = $region33
  $region32: #{gcn_forward.6} parent=0 // pred_region
    _
  $region33: #{gcn_forward.6} parent=0 // pred_fallthru
    _

// kernel: gcn_forward.5
$region0: #{gcn_forward.5}
  #allocation0 [shape = 'u32[]', space=smem, size = 0x4, offset = 0x4, fixed_abs, tag = 'smem constant byte address 0x4 - core index']
  #allocation1 [shape = 'u32[144,128]{1,0:T(1,128)}', space=vmem, size = 0x12000, scoped, tag = 'internal scratch']
  %s0 = inlined_call_operand.vmem [shape: bf16[128,128], index: 0, kind: input, shape index: {}]
  %s1 = inlined_call_operand.vmem [shape: bf16[128,128], index: 1, kind: input, shape index: {}]
  %s2 = inlined_call_operand.vmem [shape: bf16[128,128], index: 2, kind: output, shape index: {}]
  %s3 = sld [smem:[#allocation0]]
  $region18: #{gcn_forward.5} parent=0
    _
  %s5 = ssub.s32 1, %s3
  %s6 = scalar_select 0, %s5, %s3
  // Predicated region
  $region2: #{gcn_forward.5} parent=0 // pred_check
    _
  $region3: #{gcn_forward.5} parent=0 // pred_check_branch
    %8 = sbr.rel (0) target = $region5
  $region4: #{gcn_forward.5} parent=0 // pred_region
    _
  $region5: #{gcn_forward.5} parent=0 // pred_fallthru
    _
  // Predicated region
  $region6: #{gcn_forward.5} parent=0 // pred_check
    _
  $region7: #{gcn_forward.5} parent=0 // pred_check_branch
    %10 = sbr.rel (0) target = $region9
  $region8: #{gcn_forward.5} parent=0 // pred_region
    _
  $region9: #{gcn_forward.5} parent=0 // pred_fallthru
    _
  %v12 = vld [vmem:[%s0] sm:$0xf]
  %v13 = vld [vmem:[%s0 + $0x4] sm:$0xf]
  %v14 = vld [vmem:[%s0 + $0x8] sm:$0xf]
  %v15 = vld [vmem:[%s0 + $0xc] sm:$0xf]
  %v16 = vld [vmem:[%s0 + $0x10] sm:$0xf]
  %v17 = vld [vmem:[%s0 + $0x14] sm:$0xf]
  %v18 = vld [vmem:[%s0 + $0x18] sm:$0xf]
  %v19 = vld [vmem:[%s0 + $0x1c] sm:$0xf]
  %v20 = vld [vmem:[%s0 + $0x20] sm:$0xf]
  %v21 = vld [vmem:[%s0 + $0x24] sm:$0xf]
  %v22 = vld [vmem:[%s0 + $0x28] sm:$0xf]
  %v23 = vld [vmem:[%s0 + $0x2c] sm:$0xf]
  %v24 = vld [vmem:[%s0 + $0x30] sm:$0xf]
  %v25 = vld [vmem:[%s0 + $0x34] sm:$0xf]
  %v26 = vld [vmem:[%s0 + $0x38] sm:$0xf]
  %v27 = vld [vmem:[%s0 + $0x3c] sm:$0xf]
  %v28 = vld [vmem:[%s1] sm:$0xf]
  %v29 = vld [vmem:[%s1 + $0x4] sm:$0xf]
  %v30 = vld [vmem:[%s1 + $0x8] sm:$0xf]
  %v31 = vld [vmem:[%s1 + $0xc] sm:$0xf]
  %v32 = vld [vmem:[%s1 + $0x10] sm:$0xf]
  %v33 = vld [vmem:[%s1 + $0x14] sm:$0xf]
  %v34 = vld [vmem:[%s1 + $0x18] sm:$0xf]
  %v35 = vld [vmem:[%s1 + $0x1c] sm:$0xf]
  %v36 = vld [vmem:[%s1 + $0x20] sm:$0xf]
  %v37 = vld [vmem:[%s1 + $0x24] sm:$0xf]
  %v38 = vld [vmem:[%s1 + $0x28] sm:$0xf]
  %v39 = vld [vmem:[%s1 + $0x2c] sm:$0xf]
  %v40 = vld [vmem:[%s1 + $0x30] sm:$0xf]
  %v41 = vld [vmem:[%s1 + $0x34] sm:$0xf]
  %v42 = vld [vmem:[%s1 + $0x38] sm:$0xf]
  %v43 = vld [vmem:[%s1 + $0x3c] sm:$0xf]
  %v60 = vunpack.c.l.b16 %v12
  %v61 = vunpack.c.l.b16 %v13
  %v62 = vunpack.c.l.b16 %v14
  %v63 = vunpack.c.l.b16 %v15
  %v64 = vunpack.c.l.b16 %v16
  %v65 = vunpack.c.l.b16 %v17
  %v66 = vunpack.c.l.b16 %v18
  %v67 = vunpack.c.l.b16 %v19
  %v68 = vunpack.c.l.b16 %v20
  %v69 = vunpack.c.l.b16 %v21
  %v70 = vunpack.c.l.b16 %v22
  %v71 = vunpack.c.l.b16 %v23
  %v72 = vunpack.c.l.b16 %v24
  %v73 = vunpack.c.l.b16 %v25
  %v74 = vunpack.c.l.b16 %v26
  %v75 = vunpack.c.l.b16 %v27
  %v76 = vpack.c.b16 %v61, %v60
  %v77 = vpack.c.b16 %v63, %v62
  %v78 = vpack.c.b16 %v65, %v64
  %v79 = vpack.c.b16 %v67, %v66
  %v80 = vpack.c.b16 %v69, %v68
  %v81 = vpack.c.b16 %v71, %v70
  %v82 = vpack.c.b16 %v73, %v72
  %v83 = vpack.c.b16 %v75, %v74
  %v108 = vunpack.c.l.b16 %v28
  %v109 = vunpack.c.l.b16 %v29
  %v110 = vunpack.c.l.b16 %v30
  %v111 = vunpack.c.l.b16 %v31
  %v112 = vunpack.c.l.b16 %v32
  %v113 = vunpack.c.l.b16 %v33
  %v114 = vunpack.c.l.b16 %v34
  %v115 = vunpack.c.l.b16 %v35
  %v116 = vunpack.c.l.b16 %v36
  %v117 = vunpack.c.l.b16 %v37
  %v118 = vunpack.c.l.b16 %v38
  %v119 = vunpack.c.l.b16 %v39
  %v120 = vunpack.c.l.b16 %v40
  %v121 = vunpack.c.l.b16 %v41
  %v122 = vunpack.c.l.b16 %v42
  %v123 = vunpack.c.l.b16 %v43
  %v124 = vpack.c.b16 %v109, %v108
  %v125 = vpack.c.b16 %v111, %v110
  %v126 = vpack.c.b16 %v113, %v112
  %v127 = vpack.c.b16 %v115, %v114
  %v128 = vpack.c.b16 %v117, %v116
  %v129 = vpack.c.b16 %v119, %v118
  %v130 = vpack.c.b16 %v121, %v120
  %v131 = vpack.c.b16 %v123, %v122
  %140 = vmatprep.subr.bf16.mxu0 0
  %141 = vmatpush1.bf16.msra.mxu0 %v131
  %142 = vmatprep.subr.bf16.mxu0 0
  %143 = vmatpush1.bf16.msra.mxu0 %v130
  %144 = vmatprep.subr.bf16.mxu0 0
  %145 = vmatpush1.bf16.msra.mxu0 %v129
  %146 = vmatprep.subr.bf16.mxu0 0
  %147 = vmatpush1.bf16.msra.mxu0 %v128
  %148 = vmatprep.subr.bf16.mxu0 0
  %149 = vmatpush1.bf16.msra.mxu0 %v127
  %150 = vmatprep.subr.bf16.mxu0 0
  %151 = vmatpush1.bf16.msra.mxu0 %v126
  %152 = vmatprep.subr.bf16.mxu0 0
  %153 = vmatpush1.bf16.msra.mxu0 %v125
  %154 = vmatprep.subr.bf16.mxu0 0
  %155 = vmatpush1.bf16.msra.mxu0 %v124
  %156 = vmatprep.subr.bf16.mxu0 0
  %157 = vmatpush2.bf16.msra.mxu0 0
  %158 = vmatprep.subr.bf16.mxu0 0
  %159 = vmatpush2.bf16.msra.mxu0 0
  %160 = vmatprep.subr.bf16.mxu0 0
  %161 = vmatpush2.bf16.msra.mxu0 0
  %162 = vmatprep.subr.bf16.mxu0 0
  %163 = vmatpush2.bf16.msra.mxu0 0
  %164 = vmatprep.subr.bf16.mxu0 0
  %165 = vmatpush2.bf16.msra.mxu0 0
  %166 = vmatprep.subr.bf16.mxu0 0
  %167 = vmatpush2.bf16.msra.mxu0 0
  %168 = vmatprep.subr.bf16.mxu0 0
  %169 = vmatpush2.bf16.msra.mxu0 0
  %170 = vmatprep.subr.bf16.mxu0 0
  %171 = vmatpush2.bf16.msra.mxu0 0
  %172 = vmatprep.mubr.bf16.mxu0 0
  %173 = vmatmul.mubr.bf16.gmra.mxu0 %v76
  %v174 = vpop.f32.mrf.mxu0
  %v175 = vadd.f32 0.0, %v174
  %v176 = vpop.f32.mrf.mxu0
  %v177 = vpop.f32.mrf.mxu0
  %v178 = vadd.f32 0.0, %v177
  %v179 = vpop.f32.mrf.mxu0
  %180 = vmatprep.mubr.bf16.mxu0 0
  %181 = vmatmul.mubr.bf16.gmra.mxu0 %v77
  %v182 = vpop.f32.mrf.mxu0
  %v183 = vadd.f32 0.0, %v182
  %v184 = vpop.f32.mrf.mxu0
  %v185 = vpop.f32.mrf.mxu0
  %v186 = vadd.f32 0.0, %v185
  %v187 = vpop.f32.mrf.mxu0
  %188 = vmatprep.mubr.bf16.mxu0 0
  %189 = vmatmul.mubr.bf16.gmra.mxu0 %v78
  %v190 = vpop.f32.mrf.mxu0
  %v191 = vadd.f32 0.0, %v190
  %v192 = vpop.f32.mrf.mxu0
  %v193 = vpop.f32.mrf.mxu0
  %v194 = vadd.f32 0.0, %v193
  %v195 = vpop.f32.mrf.mxu0
  %196 = vmatprep.mubr.bf16.mxu0 0
  %197 = vmatmul.mubr.bf16.gmra.mxu0 %v79
  %v198 = vpop.f32.mrf.mxu0
  %v199 = vadd.f32 0.0, %v198
  %v200 = vpop.f32.mrf.mxu0
  %v201 = vpop.f32.mrf.mxu0
  %v202 = vadd.f32 0.0, %v201
  %v203 = vpop.f32.mrf.mxu0
  %204 = vmatprep.mubr.bf16.mxu0 0
  %205 = vmatmul.mubr.bf16.gmra.mxu0 %v80
  %v206 = vpop.f32.mrf.mxu0
  %v207 = vadd.f32 0.0, %v206
  %v208 = vpop.f32.mrf.mxu0
  %v209 = vpop.f32.mrf.mxu0
  %v210 = vadd.f32 0.0, %v209
  %v211 = vpop.f32.mrf.mxu0
  %212 = vmatprep.mubr.bf16.mxu0 0
  %213 = vmatmul.mubr.bf16.gmra.mxu0 %v81
  %v214 = vpop.f32.mrf.mxu0
  %v215 = vadd.f32 0.0, %v214
  %v216 = vpop.f32.mrf.mxu0
  %v217 = vpop.f32.mrf.mxu0
  %v218 = vadd.f32 0.0, %v217
  %v219 = vpop.f32.mrf.mxu0
  %220 = vmatprep.mubr.bf16.mxu0 0
  %221 = vmatmul.mubr.bf16.gmra.mxu0 %v82
  %v222 = vpop.f32.mrf.mxu0
  %v223 = vadd.f32 0.0, %v222
  %v224 = vpop.f32.mrf.mxu0
  %v225 = vpop.f32.mrf.mxu0
  %v226 = vadd.f32 0.0, %v225
  %v227 = vpop.f32.mrf.mxu0
  %228 = vmatprep.mubr.bf16.mxu0 0
  %229 = vmatmul.mubr.bf16.gmra.mxu0 %v83
  %v230 = vpop.f32.mrf.mxu0
  %v231 = vadd.f32 0.0, %v230
  %v232 = vpop.f32.mrf.mxu0
  %v233 = vpop.f32.mrf.mxu0
  %v234 = vadd.f32 0.0, %v233
  %v235 = vpop.f32.mrf.mxu0
  %236 = vdwg.mxu0
  %v237 = vpack.c.bf16 %v178, %v175
  %v238 = vpack.c.bf16 %v186, %v183
  %v239 = vpack.c.bf16 %v194, %v191
  %v240 = vpack.c.bf16 %v202, %v199
  %v241 = vpack.c.bf16 %v210, %v207
  %v242 = vpack.c.bf16 %v218, %v215
  %v243 = vpack.c.bf16 %v226, %v223
  %v244 = vpack.c.bf16 %v234, %v231
  %v253 = vunpack.c.l.b16 %v237
  %v254 = vunpack.c.h.b16 %v237
  %v255 = vunpack.c.l.b16 %v238
  %v256 = vunpack.c.h.b16 %v238
  %v257 = vunpack.c.l.b16 %v239
  %v258 = vunpack.c.h.b16 %v239
  %v259 = vunpack.c.l.b16 %v240
  %v260 = vunpack.c.h.b16 %v240
  %v261 = vunpack.c.l.b16 %v241
  %v262 = vunpack.c.h.b16 %v241
  %v263 = vunpack.c.l.b16 %v242
  %v264 = vunpack.c.h.b16 %v242
  %v265 = vunpack.c.l.b16 %v243
  %v266 = vunpack.c.h.b16 %v243
  %v267 = vunpack.c.l.b16 %v244
  %v268 = vunpack.c.h.b16 %v244
  %v269 = vpack.c.b16 %v253, %v253
  %v270 = vpack.c.b16 %v254, %v254
  %v271 = vpack.c.b16 %v255, %v255
  %v272 = vpack.c.b16 %v256, %v256
  %v273 = vpack.c.b16 %v257, %v257
  %v274 = vpack.c.b16 %v258, %v258
  %v275 = vpack.c.b16 %v259, %v259
  %v276 = vpack.c.b16 %v260, %v260
  %v277 = vpack.c.b16 %v261, %v261
  %v278 = vpack.c.b16 %v262, %v262
  %v279 = vpack.c.b16 %v263, %v263
  %v280 = vpack.c.b16 %v264, %v264
  %v281 = vpack.c.b16 %v265, %v265
  %v282 = vpack.c.b16 %v266, %v266
  %v283 = vpack.c.b16 %v267, %v267
  %v284 = vpack.c.b16 %v268, %v268
  %301 = vst [vmem:[%s2] sm:$0xf] %v269
  %302 = vst [vmem:[%s2 + $0x4] sm:$0xf] %v270
  %303 = vst [vmem:[%s2 + $0x8] sm:$0xf] %v271
  %304 = vst [vmem:[%s2 + $0xc] sm:$0xf] %v272
  %305 = vst [vmem:[%s2 + $0x10] sm:$0xf] %v273
  %306 = vst [vmem:[%s2 + $0x14] sm:$0xf] %v274
  %307 = vst [vmem:[%s2 + $0x18] sm:$0xf] %v275
  %308 = vst [vmem:[%s2 + $0x1c] sm:$0xf] %v276
  %309 = vst [vmem:[%s2 + $0x20] sm:$0xf] %v277
  %310 = vst [vmem:[%s2 + $0x24] sm:$0xf] %v278
  %311 = vst [vmem:[%s2 + $0x28] sm:$0xf] %v279
  %312 = vst [vmem:[%s2 + $0x2c] sm:$0xf] %v280
  %313 = vst [vmem:[%s2 + $0x30] sm:$0xf] %v281
  %314 = vst [vmem:[%s2 + $0x34] sm:$0xf] %v282
  %315 = vst [vmem:[%s2 + $0x38] sm:$0xf] %v283
  %316 = vst [vmem:[%s2 + $0x3c] sm:$0xf] %v284
  // Predicated region
  $region10: #{gcn_forward.5} parent=0 // pred_check
    _
  $region11: #{gcn_forward.5} parent=0 // pred_check_branch
    %318 = sbr.rel (0) target = $region13
  $region12: #{gcn_forward.5} parent=0 // pred_region
    _
  $region13: #{gcn_forward.5} parent=0 // pred_fallthru
    _
  // Predicated region
  $region14: #{gcn_forward.5} parent=0 // pred_check
    _
  $region15: #{gcn_forward.5} parent=0 // pred_check_branch
    %320 = sbr.rel (0) target = $region17
  $region16: #{gcn_forward.5} parent=0 // pred_region
    _
  $region17: #{gcn_forward.5} parent=0 // pred_fallthru
    _

// kernel: gcn_forward.9
$region0: #{gcn_forward.9}
  #allocation0 [shape = 'u32[]', space=smem, size = 0x4, offset = 0x4, fixed_abs, tag = 'smem constant byte address 0x4 - core index']
  #allocation1 [shape = 'u32[144,128]{1,0:T(1,128)}', space=vmem, size = 0x12000, scoped, tag = 'internal scratch']
  #allocation2 [shape = 'f32[8,128]{1,0:T(8,128)}', space=vmem, size = 0x1000, scoped, tag = 'scratch operand']
  %s0 = inlined_call_operand.vmem [shape: bf16[8,128], index: 0, kind: input, shape index: {}]
  %s1 = inlined_call_operand.vmem [shape: bf16[128,128], index: 1, kind: input, shape index: {}]
  %s2 = inlined_call_operand.vmem [shape: bf16[128,128], index: 2, kind: input, shape index: {}]
  %s3 = inlined_call_operand.vmem [shape: f32[1,128], index: 3, kind: input, shape index: {}]
  %s4 = inlined_call_operand.vmem [shape: f32[8,128], index: 4, kind: output, shape index: {}]
  %s5 = sld [smem:[#allocation0]]
  $region34: #{gcn_forward.9} parent=0
    _
  %s7 = ssub.s32 1, %s5
  %s8 = scalar_select 0, %s7, %s5
  // Predicated region
  $region2: #{gcn_forward.9} parent=0 // pred_check
    _
  $region3: #{gcn_forward.9} parent=0 // pred_check_branch
    %10 = sbr.rel (0) target = $region5
  $region4: #{gcn_forward.9} parent=0 // pred_region
    _
  $region5: #{gcn_forward.9} parent=0 // pred_fallthru
    _
  // Predicated region
  $region6: #{gcn_forward.9} parent=0 // pred_check
    _
  $region7: #{gcn_forward.9} parent=0 // pred_check_branch
    %12 = sbr.rel (0) target = $region9
  $region8: #{gcn_forward.9} parent=0 // pred_region
    _
  $region9: #{gcn_forward.9} parent=0 // pred_fallthru
    _
  // Predicated region
  $region10: #{gcn_forward.9} parent=0 // pred_check
    _
  $region11: #{gcn_forward.9} parent=0 // pred_check_branch
    %14 = sbr.rel (0) target = $region13
  $region12: #{gcn_forward.9} parent=0 // pred_region
    _
  $region13: #{gcn_forward.9} parent=0 // pred_fallthru
    _
  // Predicated region
  $region14: #{gcn_forward.9} parent=0 // pred_check
    _
  $region15: #{gcn_forward.9} parent=0 // pred_check_branch
    %16 = sbr.rel (0) target = $region17
  $region16: #{gcn_forward.9} parent=0 // pred_region
    _
  $region17: #{gcn_forward.9} parent=0 // pred_fallthru
    _
  %p18 = scmp.eq.s32.totalorder 0, 0
  // Predicated region
  $region18: #{gcn_forward.9} parent=0 // pred_check
    %p19 = pneg %p18
  $region19: #{gcn_forward.9} parent=0 // pred_check_branch
    %21 = sbr.rel (%p19) target = $region21
  $region20: #{gcn_forward.9} parent=0 // pred_region
    %22 = vst [vmem:[#allocation2] sm:$0xff] 0.0
  $region21: #{gcn_forward.9} parent=0 // pred_fallthru
    _
  %v23 = vld [vmem:[#allocation2] sm:$0xff]
  %v24 = vld [vmem:[%s0] sm:$0xf]
  %v25 = vld [vmem:[%s1] sm:$0xf]
  %v26 = vld [vmem:[%s1 + $0x4] sm:$0xf]
  %v27 = vld [vmem:[%s1 + $0x8] sm:$0xf]
  %v28 = vld [vmem:[%s1 + $0xc] sm:$0xf]
  %v29 = vld [vmem:[%s1 + $0x10] sm:$0xf]
  %v30 = vld [vmem:[%s1 + $0x14] sm:$0xf]
  %v31 = vld [vmem:[%s1 + $0x18] sm:$0xf]
  %v32 = vld [vmem:[%s1 + $0x1c] sm:$0xf]
  %v33 = vld [vmem:[%s1 + $0x20] sm:$0xf]
  %v34 = vld [vmem:[%s1 + $0x24] sm:$0xf]
  %v35 = vld [vmem:[%s1 + $0x28] sm:$0xf]
  %v36 = vld [vmem:[%s1 + $0x2c] sm:$0xf]
  %v37 = vld [vmem:[%s1 + $0x30] sm:$0xf]
  %v38 = vld [vmem:[%s1 + $0x34] sm:$0xf]
  %v39 = vld [vmem:[%s1 + $0x38] sm:$0xf]
  %v40 = vld [vmem:[%s1 + $0x3c] sm:$0xf]
  %v57 = vunpack.c.l.b16 %v25
  %v58 = vunpack.c.l.b16 %v26
  %v59 = vunpack.c.l.b16 %v27
  %v60 = vunpack.c.l.b16 %v28
  %v61 = vunpack.c.l.b16 %v29
  %v62 = vunpack.c.l.b16 %v30
  %v63 = vunpack.c.l.b16 %v31
  %v64 = vunpack.c.l.b16 %v32
  %v65 = vunpack.c.l.b16 %v33
  %v66 = vunpack.c.l.b16 %v34
  %v67 = vunpack.c.l.b16 %v35
  %v68 = vunpack.c.l.b16 %v36
  %v69 = vunpack.c.l.b16 %v37
  %v70 = vunpack.c.l.b16 %v38
  %v71 = vunpack.c.l.b16 %v39
  %v72 = vunpack.c.l.b16 %v40
  %v73 = vpack.c.b16 %v58, %v57
  %v74 = vpack.c.b16 %v60, %v59
  %v75 = vpack.c.b16 %v62, %v61
  %v76 = vpack.c.b16 %v64, %v63
  %v77 = vpack.c.b16 %v66, %v65
  %v78 = vpack.c.b16 %v68, %v67
  %v79 = vpack.c.b16 %v70, %v69
  %v80 = vpack.c.b16 %v72, %v71
  %89 = vmatprep.subr.bf16.mxu0 0
  %90 = vmatpush1.bf16.msra.mxu0 %v80
  %91 = vmatprep.subr.bf16.mxu0 0
  %92 = vmatpush1.bf16.msra.mxu0 %v79
  %93 = vmatprep.subr.bf16.mxu0 0
  %94 = vmatpush1.bf16.msra.mxu0 %v78
  %95 = vmatprep.subr.bf16.mxu0 0
  %96 = vmatpush1.bf16.msra.mxu0 %v77
  %97 = vmatprep.subr.bf16.mxu0 0
  %98 = vmatpush1.bf16.msra.mxu0 %v76
  %99 = vmatprep.subr.bf16.mxu0 0
  %100 = vmatpush1.bf16.msra.mxu0 %v75
  %101 = vmatprep.subr.bf16.mxu0 0
  %102 = vmatpush1.bf16.msra.mxu0 %v74
  %103 = vmatprep.subr.bf16.mxu0 0
  %104 = vmatpush1.bf16.msra.mxu0 %v73
  %105 = vmatprep.subr.bf16.mxu0 0
  %106 = vmatpush2.bf16.msra.mxu0 0
  %107 = vmatprep.subr.bf16.mxu0 0
  %108 = vmatpush2.bf16.msra.mxu0 0
  %109 = vmatprep.subr.bf16.mxu0 0
  %110 = vmatpush2.bf16.msra.mxu0 0
  %111 = vmatprep.subr.bf16.mxu0 0
  %112 = vmatpush2.bf16.msra.mxu0 0
  %113 = vmatprep.subr.bf16.mxu0 0
  %114 = vmatpush2.bf16.msra.mxu0 0
  %115 = vmatprep.subr.bf16.mxu0 0
  %116 = vmatpush2.bf16.msra.mxu0 0
  %117 = vmatprep.subr.bf16.mxu0 0
  %118 = vmatpush2.bf16.msra.mxu0 0
  %119 = vmatprep.subr.bf16.mxu0 0
  %120 = vmatpush2.bf16.msra.mxu0 0
  %121 = vmatprep.mubr.bf16.mxu0 0
  %122 = vmatmul.mubr.bf16.gmra.mxu0 %v24
  %v123 = vpop.f32.mrf.mxu0
  %v124 = vadd.f32 0.0, %v123
  %v125 = vpop.f32.mrf.mxu0
  %v126 = vpop.f32.mrf.mxu0
  %v127 = vpop.f32.mrf.mxu0
  %128 = vdwg.mxu0
  %v129 = vadd.f32 %v23, %v124
  %130 = vst [vmem:[#allocation2] sm:$0xff] %v129
  // Predicated region
  $region22: #{gcn_forward.9} parent=0 // pred_check
    %p131 = pneg %p18
  $region23: #{gcn_forward.9} parent=0 // pred_check_branch
    %133 = sbr.rel (%p131) target = $region25
  $region24: #{gcn_forward.9} parent=0 // pred_region
    %v134 = vld [vmem:[#allocation2] sm:$0xff]
    %v135 = vpack.c.bf16 %v134, %v134
    %v136 = vld [vmem:[%s2] sm:$0xf]
    %v137 = vld [vmem:[%s2 + $0x4] sm:$0xf]
    %v138 = vld [vmem:[%s2 + $0x8] sm:$0xf]
    %v139 = vld [vmem:[%s2 + $0xc] sm:$0xf]
    %v140 = vld [vmem:[%s2 + $0x10] sm:$0xf]
    %v141 = vld [vmem:[%s2 + $0x14] sm:$0xf]
    %v142 = vld [vmem:[%s2 + $0x18] sm:$0xf]
    %v143 = vld [vmem:[%s2 + $0x1c] sm:$0xf]
    %v144 = vld [vmem:[%s2 + $0x20] sm:$0xf]
    %v145 = vld [vmem:[%s2 + $0x24] sm:$0xf]
    %v146 = vld [vmem:[%s2 + $0x28] sm:$0xf]
    %v147 = vld [vmem:[%s2 + $0x2c] sm:$0xf]
    %v148 = vld [vmem:[%s2 + $0x30] sm:$0xf]
    %v149 = vld [vmem:[%s2 + $0x34] sm:$0xf]
    %v150 = vld [vmem:[%s2 + $0x38] sm:$0xf]
    %v151 = vld [vmem:[%s2 + $0x3c] sm:$0xf]
    %v152 = vld [vmem:[%s3] sm:$0x1]
    %v154 = vlaneseq
    %v155 = vshrl.u32 %v154, 7
    %v156 = vsub.s32 0, %v155
    %v157 = vrot.slane %v152, %v156
    %v175 = vunpack.c.l.b16 %v136
    %v176 = vunpack.c.l.b16 %v137
    %v177 = vunpack.c.l.b16 %v138
    %v178 = vunpack.c.l.b16 %v139
    %v179 = vunpack.c.l.b16 %v140
    %v180 = vunpack.c.l.b16 %v141
    %v181 = vunpack.c.l.b16 %v142
    %v182 = vunpack.c.l.b16 %v143
    %v183 = vunpack.c.l.b16 %v144
    %v184 = vunpack.c.l.b16 %v145
    %v185 = vunpack.c.l.b16 %v146
    %v186 = vunpack.c.l.b16 %v147
    %v187 = vunpack.c.l.b16 %v148
    %v188 = vunpack.c.l.b16 %v149
    %v189 = vunpack.c.l.b16 %v150
    %v190 = vunpack.c.l.b16 %v151
    %v191 = vpack.c.b16 %v176, %v175
    %v192 = vpack.c.b16 %v178, %v177
    %v193 = vpack.c.b16 %v180, %v179
    %v194 = vpack.c.b16 %v182, %v181
    %v195 = vpack.c.b16 %v184, %v183
    %v196 = vpack.c.b16 %v186, %v185
    %v197 = vpack.c.b16 %v188, %v187
    %v198 = vpack.c.b16 %v190, %v189
    %207 = vmatprep.subr.bf16.mxu0 0
    %208 = vmatpush1.bf16.msra.mxu0 %v198
    %209 = vmatprep.subr.bf16.mxu0 0
    %210 = vmatpush1.bf16.msra.mxu0 %v197
    %211 = vmatprep.subr.bf16.mxu0 0
    %212 = vmatpush1.bf16.msra.mxu0 %v196
    %213 = vmatprep.subr.bf16.mxu0 0
    %214 = vmatpush1.bf16.msra.mxu0 %v195
    %215 = vmatprep.subr.bf16.mxu0 0
    %216 = vmatpush1.bf16.msra.mxu0 %v194
    %217 = vmatprep.subr.bf16.mxu0 0
    %218 = vmatpush1.bf16.msra.mxu0 %v193
    %219 = vmatprep.subr.bf16.mxu0 0
    %220 = vmatpush1.bf16.msra.mxu0 %v192
    %221 = vmatprep.subr.bf16.mxu0 0
    %222 = vmatpush1.bf16.msra.mxu0 %v191
    %223 = vmatprep.subr.bf16.mxu0 0
    %224 = vmatpush2.bf16.msra.mxu0 0
    %225 = vmatprep.subr.bf16.mxu0 0
    %226 = vmatpush2.bf16.msra.mxu0 0
    %227 = vmatprep.subr.bf16.mxu0 0
    %228 = vmatpush2.bf16.msra.mxu0 0
    %229 = vmatprep.subr.bf16.mxu0 0
    %230 = vmatpush2.bf16.msra.mxu0 0
    %231 = vmatprep.subr.bf16.mxu0 0
    %232 = vmatpush2.bf16.msra.mxu0 0
    %233 = vmatprep.subr.bf16.mxu0 0
    %234 = vmatpush2.bf16.msra.mxu0 0
    %235 = vmatprep.subr.bf16.mxu0 0
    %236 = vmatpush2.bf16.msra.mxu0 0
    %237 = vmatprep.subr.bf16.mxu0 0
    %238 = vmatpush2.bf16.msra.mxu0 0
    %239 = vmatprep.mubr.bf16.mxu0 0
    %240 = vmatmul.mubr.bf16.gmra.mxu0 %v135
    %v241 = vpop.f32.mrf.mxu0
    %v242 = vadd.f32 %v157, %v241
    %v243 = vpop.f32.mrf.mxu0
    %v244 = vpop.f32.mrf.mxu0
    %v245 = vpop.f32.mrf.mxu0
    %246 = vdwg.mxu0
    %247 = vst [vmem:[%s4] sm:$0xff] %v242
  $region25: #{gcn_forward.9} parent=0 // pred_fallthru
    _
  // Predicated region
  $region26: #{gcn_forward.9} parent=0 // pred_check
    _
  $region27: #{gcn_forward.9} parent=0 // pred_check_branch
    %249 = sbr.rel (0) target = $region29
  $region28: #{gcn_forward.9} parent=0 // pred_region
    _
  $region29: #{gcn_forward.9} parent=0 // pred_fallthru
    _
  // Predicated region
  $region30: #{gcn_forward.9} parent=0 // pred_check
    _
  $region31: #{gcn_forward.9} parent=0 // pred_check_branch
    %251 = sbr.rel (0) target = $region33
  $region32: #{gcn_forward.9} parent=0 // pred_region
    _
  $region33: #{gcn_forward.9} parent=0 // pred_fallthru
    _

</llo_original>
